<compile_context>
chip_gen: v5e
topology: v5e:2x2
jax: 0.10.0
libtpu: 0.0.40
codegen_flags: <defaults>
</compile_context>

<pallas_src>
import jax
import jax.numpy as jnp
from jax.experimental import pallas as pl
from jax.experimental.pallas import tpu as pltpu

# --- fixed diffusion schedule constants (single deterministic timestep) ---
ALPHA_BAR = 0.5
SQRT_AB = float(ALPHA_BAR ** 0.5)
SQRT_1M_AB = float((1.0 - ALPHA_BAR) ** 0.5)
SDS_W = float(1.0 - ALPHA_BAR)          # SDS weighting w(t) = 1 - alpha_bar_t

LANE = 128


def _pick_tiling(rows, n_stream_channels):
    """Pick (rows_tile, chunk_rows, n_tiles) for the pixel-row axis.

    rows_tile  : rows per grid step (sized for ~1 MiB of streamed data/step)
    chunk_rows : rows per inner compute chunk (keeps live vregs ~20)
    """
    bytes_per_row = LANE * 4 * n_stream_channels          # f32 x + noise
    target_rows = max(8, (1 << 20) // bytes_per_row)      # ~1 MiB per step
    if rows % 8 != 0:
        # TODO(synk): pad HW to a multiple of 8*128 and mask the padded pixels;
        # for awkward spatial sizes we fall back to one full-extent block.
        return rows, rows, 1
    rows_tile = 8
    r = 8
    while r <= min(rows, target_rows):
        if rows % r == 0:
            rows_tile = r
        r += 8
    return rows_tile, 8, rows // rows_tile


def diffusion_sds_loss(sketches_nchw, w_enc, w_unet, text_emb, noise_key):
    """SDS-style diffusion loss surrogate, fused into one Pallas kernel."""
    B, C, H, W = (int(s) for s in sketches_nchw.shape)
    HW = H * W
    LC = int(w_unet.shape[0])
    assert HW % LANE == 0, "H*W must be a multiple of 128"
    rows = HW // LANE

    # NCHW -> (B, C, rows, 128): pure contiguous reshape, no HBM transpose.
    x = sketches_nchw.reshape(B, C, rows, LANE)

    # Gaussian diffusion noise, one value per (latent channel, pixel).
    noise = jax.random.normal(noise_key, (B, LC, rows, LANE), jnp.float32)

    # Fold rescale (2x-1) -> VAE surrogate -> sqrt(ab)*lat + sqrt(1-ab)*noise
    # -> UNet surrogate with text conditioning -> (noise_pred - noise) into
    #   diff[:, j] = sum_c x[:, c]*W1[c, j] + sum_l noise[:, l]*W2[l, j] + bias[j]
    w_enc32 = w_enc.astype(jnp.float32)
    w_unet32 = w_unet.astype(jnp.float32)
    w_eu = jnp.dot(w_enc32, w_unet32)                                   # (C, LC)
    w1 = (2.0 * SQRT_AB) * w_eu                                         # (C, LC)
    w2 = SQRT_1M_AB * w_unet32 - jnp.eye(LC, dtype=jnp.float32)         # (LC, LC)
    bias = (jnp.dot(text_emb.astype(jnp.float32), w_unet32)
            - SQRT_AB * jnp.sum(w_eu, axis=0, keepdims=True))           # (1, LC)

    rows_tile, chunk, nt = _pick_tiling(rows, C + LC)
    n_chunks = rows_tile // chunk

    def kernel(x_ref, n_ref, w1_ref, w2_ref, b_ref, out_ref):
        first = (pl.program_id(0) == 0) & (pl.program_id(1) == 0)

        @pl.when(first)
        def _init():
            out_ref[...] = jnp.zeros_like(out_ref)

        # Hoist the tiny SMEM constants out of the chunk loop (<= 32 scalars).
        w1v = [[w1_ref[c, j] for j in range(LC)] for c in range(C)]
        w2v = [[w2_ref[l, j] for j in range(LC)] for l in range(LC)]
        bv = [b_ref[0, j] for j in range(LC)]

        # Chunked streaming pass over the sublane-dense (rows_tile, 128) block;
        # static trip count, fully unrolled; live set stays ~20 vregs.
        step_acc = jnp.zeros((chunk, LANE), jnp.float32)
        for k in range(n_chunks):
            r0 = k * chunk
            xs = [x_ref[c, pl.ds(r0, chunk), :].astype(jnp.float32)
                  for c in range(C)]
            ns = [n_ref[l, pl.ds(r0, chunk), :] for l in range(LC)]
            ss = None
            for j in range(LC):
                d = xs[0] * w1v[0][j]
                for c in range(1, C):
                    d = d + xs[c] * w1v[c][j]
                for l in range(LC):
                    d = d + ns[l] * w2v[l][j]
                d = d + bv[j]
                ss = d * d if ss is None else ss + d * d
            step_acc = step_acc + ss

        # VMEM-resident accumulator: out block index is constant over the grid.
        out_ref[...] += step_acc

    partial = pl.pallas_call(
        kernel,
        out_shape=jax.ShapeDtypeStruct((chunk, LANE), jnp.float32),
        grid_spec=pltpu.PrefetchScalarGridSpec(
            num_scalar_prefetch=0,
            grid=(B, nt),
            in_specs=[
                # sketches: channels on the 3rd-minor dim, dense (rows, 128) tail.
                pl.BlockSpec((None, C, rows_tile, LANE),
                             lambda b, t: (b, 0, t, 0)),
                # noise: same layout, LC channels.
                pl.BlockSpec((None, LC, rows_tile, LANE),
                             lambda b, t: (b, 0, t, 0)),
                # Tiny folded constants live in SMEM, read as scalars.
                pl.BlockSpec(memory_space=pltpu.MemorySpace.SMEM),   # W1 (C, LC)
                pl.BlockSpec(memory_space=pltpu.MemorySpace.SMEM),   # W2 (LC, LC)
                pl.BlockSpec(memory_space=pltpu.MemorySpace.SMEM),   # bias (1, LC)
            ],
            out_specs=pl.BlockSpec((chunk, LANE), lambda b, t: (0, 0)),
        ),
        compiler_params=pltpu.CompilerParams(
            # Output is revisited on every step -> both axes must be arbitrary.
            # TODO(synk): on v7x a leading CORE_PARALLEL axis (2 TCs) would be
            # ~2x; omitted to stay portable across v5e/v6e/interpret.
            dimension_semantics=("arbitrary", "arbitrary"),
            vmem_limit_bytes=32 * 1024 * 1024,
        ),
    )(x, noise, w1, w2, bias)

    # TODO(synk): the reference SDS path (SpecifyGradient) uses a sum-style
    # reduction of w*(noise_pred - noise); we keep the surrogate's mean-squared
    # reduction (0.5 * w * mean(diff^2)) for continuity with the prior port.
    denom = float(B * HW * LC)
    return 0.5 * SDS_W * jnp.sum(partial) / denom


class LossPallas:
    """JAX/Pallas port of models/loss.py::Loss (diffusion-only path)."""

    LATENT_C = 4

    def __init__(self, key, img_channels=3):
        self.losses_to_apply = ["diffusion"]
        k1, k2, k3 = jax.random.split(key, 3)
        # TODO(synk): the frozen StableDiffusion VAE/UNet and CLIP text encoder
        # are not reproducible here; deterministic linear surrogates stand in.
        self.w_enc = (jax.random.normal(k1, (img_channels, self.LATENT_C),
                                        jnp.float32) * 0.1)
        self.w_unet = (jnp.eye(self.LATENT_C, dtype=jnp.float32)
                       + 0.05 * jax.random.normal(
                           k2, (self.LATENT_C, self.LATENT_C), jnp.float32))
        self.text_emb = (jax.random.normal(k3, (1, self.LATENT_C),
                                           jnp.float32) * 0.1)

    def __call__(self, sketches, targets=None, color_parameters=None,
                 renderer=None, epoch=0, points_optim=None, grad_clip=None,
                 mode="train", noise_key=None):
        if noise_key is None:
            noise_key = jax.random.PRNGKey(1)
        # TODO(synk): torchvision augmentations (RandomPerspective/ResizedCrop)
        # have no Pallas equivalent; with NUM_AUGS == 1 they are skipped anyway.
        losses_dict = {}
        loss_coeffs = {name: 1.0 for name in self.losses_to_apply}
        for name in self.losses_to_apply:
            if name == "diffusion":
                losses_dict[name] = diffusion_sds_loss(
                    sketches, self.w_enc, self.w_unet, self.text_emb, noise_key)
        for k in self.losses_to_apply:
            losses_dict[k] = losses_dict[k] * loss_coeffs[k]
        return losses_dict


if __name__ == "__main__":
    key = jax.random.PRNGKey(0)
    k_param, k_sketch, k_noise = jax.random.split(key, 3)

    # sketches in [0, 1], PyTorch NCHW layout
    sketches = jax.random.uniform(k_sketch, (2, 3, 16, 16), dtype=jnp.float32)

    loss_module = LossPallas(k_param, img_channels=3)
    losses = loss_module(sketches, targets=None, color_parameters=None,
                         renderer=None, epoch=0, noise_key=k_noise)

    val = jax.block_until_ready(losses["diffusion"])
    assert jnp.isfinite(val)
    print("KERNEL_OK")
</pallas_src>

<mosaic_0001>
module attributes {stable_mosaic.version = 11 : i64} {
  func.func @kernel(%arg0: i32, %arg1: i32, %arg2: memref<1x3x2x128xf32, #tpu.memory_space<vmem>>, %arg3: memref<1x4x2x128xf32, #tpu.memory_space<vmem>>, %arg4: memref<3x4xf32, #tpu.memory_space<smem>>, %arg5: memref<4x4xf32, #tpu.memory_space<smem>>, %arg6: memref<1x4xf32, #tpu.memory_space<smem>>, %arg7: memref<2x128xf32, #tpu.memory_space<vmem>>) attributes {dimension_semantics = [#tpu.dimension_semantics<arbitrary>, #tpu.dimension_semantics<arbitrary>], iteration_bounds = array<i64: 2, 1>, scalar_prefetch = 0 : i64, scratch_operands = 0 : i64, tpu.core_type = #tpu.core_type<tc>, window_params = [{transform_indices = @transform_0, window_bounds = array<i64: 1, 3, 2, 128>}, {transform_indices = @transform_1, window_bounds = array<i64: 1, 4, 2, 128>}, {transform_indices = @transform_2, window_bounds = array<i64: 3, 4>}, {transform_indices = @transform_3, window_bounds = array<i64: 4, 4>}, {transform_indices = @transform_4, window_bounds = array<i64: 1, 4>}, {pipeline_mode = #tpu.pipeline_mode<synchronous>, transform_indices = @transform_5, window_bounds = array<i64: 2, 128>}]} {
    %c0_i32 = arith.constant 0 : i32
    %0 = arith.cmpi eq, %arg0, %c0_i32 : i32
    %c0_i32_0 = arith.constant 0 : i32
    %1 = arith.cmpi eq, %arg1, %c0_i32_0 : i32
    %2 = arith.andi %0, %1 : i1
    %3 = arith.extui %2 : i1 to i32
    %c0_i32_1 = arith.constant 0 : i32
    %4 = arith.cmpi ne, %3, %c0_i32_1 : i32
    scf.if %4 {
      %cst_94 = arith.constant 0.000000e+00 : f32
      %151 = vector.broadcast %cst_94 : f32 to vector<2x128xf32>
      %c0_95 = arith.constant 0 : index
      %c0_96 = arith.constant 0 : index
      %152 = vector.load %arg7[%c0_95, %c0_96] : memref<2x128xf32, #tpu.memory_space<vmem>>, vector<2x128xf32>
      tpu.vector_store %arg7[%c0_95, %c0_96], %151 {strides = array<i32>} : memref<2x128xf32, #tpu.memory_space<vmem>>, vector<2x128xf32>,
    } else {
    }
    %c0 = arith.constant 0 : index
    %c0_2 = arith.constant 0 : index
    %5 = memref.load %arg4[%c0, %c0_2] : memref<3x4xf32, #tpu.memory_space<smem>>
    %c0_3 = arith.constant 0 : index
    %c1 = arith.constant 1 : index
    %6 = memref.load %arg4[%c0_3, %c1] : memref<3x4xf32, #tpu.memory_space<smem>>
    %c0_4 = arith.constant 0 : index
    %c2 = arith.constant 2 : index
    %7 = memref.load %arg4[%c0_4, %c2] : memref<3x4xf32, #tpu.memory_space<smem>>
    %c0_5 = arith.constant 0 : index
    %c3 = arith.constant 3 : index
    %8 = memref.load %arg4[%c0_5, %c3] : memref<3x4xf32, #tpu.memory_space<smem>>
    %c1_6 = arith.constant 1 : index
    %c0_7 = arith.constant 0 : index
    %9 = memref.load %arg4[%c1_6, %c0_7] : memref<3x4xf32, #tpu.memory_space<smem>>
    %c1_8 = arith.constant 1 : index
    %c1_9 = arith.constant 1 : index
    %10 = memref.load %arg4[%c1_8, %c1_9] : memref<3x4xf32, #tpu.memory_space<smem>>
    %c1_10 = arith.constant 1 : index
    %c2_11 = arith.constant 2 : index
    %11 = memref.load %arg4[%c1_10, %c2_11] : memref<3x4xf32, #tpu.memory_space<smem>>
    %c1_12 = arith.constant 1 : index
    %c3_13 = arith.constant 3 : index
    %12 = memref.load %arg4[%c1_12, %c3_13] : memref<3x4xf32, #tpu.memory_space<smem>>
    %c2_14 = arith.constant 2 : index
    %c0_15 = arith.constant 0 : index
    %13 = memref.load %arg4[%c2_14, %c0_15] : memref<3x4xf32, #tpu.memory_space<smem>>
    %c2_16 = arith.constant 2 : index
    %c1_17 = arith.constant 1 : index
    %14 = memref.load %arg4[%c2_16, %c1_17] : memref<3x4xf32, #tpu.memory_space<smem>>
    %c2_18 = arith.constant 2 : index
    %c2_19 = arith.constant 2 : index
    %15 = memref.load %arg4[%c2_18, %c2_19] : memref<3x4xf32, #tpu.memory_space<smem>>
    %c2_20 = arith.constant 2 : index
    %c3_21 = arith.constant 3 : index
    %16 = memref.load %arg4[%c2_20, %c3_21] : memref<3x4xf32, #tpu.memory_space<smem>>
    %c0_22 = arith.constant 0 : index
    %c0_23 = arith.constant 0 : index
    %17 = memref.load %arg5[%c0_22, %c0_23] : memref<4x4xf32, #tpu.memory_space<smem>>
    %c0_24 = arith.constant 0 : index
    %c1_25 = arith.constant 1 : index
    %18 = memref.load %arg5[%c0_24, %c1_25] : memref<4x4xf32, #tpu.memory_space<smem>>
    %c0_26 = arith.constant 0 : index
    %c2_27 = arith.constant 2 : index
    %19 = memref.load %arg5[%c0_26, %c2_27] : memref<4x4xf32, #tpu.memory_space<smem>>
    %c0_28 = arith.constant 0 : index
    %c3_29 = arith.constant 3 : index
    %20 = memref.load %arg5[%c0_28, %c3_29] : memref<4x4xf32, #tpu.memory_space<smem>>
    %c1_30 = arith.constant 1 : index
    %c0_31 = arith.constant 0 : index
    %21 = memref.load %arg5[%c1_30, %c0_31] : memref<4x4xf32, #tpu.memory_space<smem>>
    %c1_32 = arith.constant 1 : index
    %c1_33 = arith.constant 1 : index
    %22 = memref.load %arg5[%c1_32, %c1_33] : memref<4x4xf32, #tpu.memory_space<smem>>
    %c1_34 = arith.constant 1 : index
    %c2_35 = arith.constant 2 : index
    %23 = memref.load %arg5[%c1_34, %c2_35] : memref<4x4xf32, #tpu.memory_space<smem>>
    %c1_36 = arith.constant 1 : index
    %c3_37 = arith.constant 3 : index
    %24 = memref.load %arg5[%c1_36, %c3_37] : memref<4x4xf32, #tpu.memory_space<smem>>
    %c2_38 = arith.constant 2 : index
    %c0_39 = arith.constant 0 : index
    %25 = memref.load %arg5[%c2_38, %c0_39] : memref<4x4xf32, #tpu.memory_space<smem>>
    %c2_40 = arith.constant 2 : index
    %c1_41 = arith.constant 1 : index
    %26 = memref.load %arg5[%c2_40, %c1_41] : memref<4x4xf32, #tpu.memory_space<smem>>
    %c2_42 = arith.constant 2 : index
    %c2_43 = arith.constant 2 : index
    %27 = memref.load %arg5[%c2_42, %c2_43] : memref<4x4xf32, #tpu.memory_space<smem>>
    %c2_44 = arith.constant 2 : index
    %c3_45 = arith.constant 3 : index
    %28 = memref.load %arg5[%c2_44, %c3_45] : memref<4x4xf32, #tpu.memory_space<smem>>
    %c3_46 = arith.constant 3 : index
    %c0_47 = arith.constant 0 : index
    %29 = memref.load %arg5[%c3_46, %c0_47] : memref<4x4xf32, #tpu.memory_space<smem>>
    %c3_48 = arith.constant 3 : index
    %c1_49 = arith.constant 1 : index
    %30 = memref.load %arg5[%c3_48, %c1_49] : memref<4x4xf32, #tpu.memory_space<smem>>
    %c3_50 = arith.constant 3 : index
    %c2_51 = arith.constant 2 : index
    %31 = memref.load %arg5[%c3_50, %c2_51] : memref<4x4xf32, #tpu.memory_space<smem>>
    %c3_52 = arith.constant 3 : index
    %c3_53 = arith.constant 3 : index
    %32 = memref.load %arg5[%c3_52, %c3_53] : memref<4x4xf32, #tpu.memory_space<smem>>
    %c0_54 = arith.constant 0 : index
    %c0_55 = arith.constant 0 : index
    %33 = memref.load %arg6[%c0_54, %c0_55] : memref<1x4xf32, #tpu.memory_space<smem>>
    %c0_56 = arith.constant 0 : index
    %c1_57 = arith.constant 1 : index
    %34 = memref.load %arg6[%c0_56, %c1_57] : memref<1x4xf32, #tpu.memory_space<smem>>
    %c0_58 = arith.constant 0 : index
    %c2_59 = arith.constant 2 : index
    %35 = memref.load %arg6[%c0_58, %c2_59] : memref<1x4xf32, #tpu.memory_space<smem>>
    %c0_60 = arith.constant 0 : index
    %c3_61 = arith.constant 3 : index
    %36 = memref.load %arg6[%c0_60, %c3_61] : memref<1x4xf32, #tpu.memory_space<smem>>
    %cst = arith.constant 0.000000e+00 : f32
    %37 = vector.broadcast %cst : f32 to vector<2x128xf32>
    %c0_62 = arith.constant 0 : index
    %c0_63 = arith.constant 0 : index
    %c0_64 = arith.constant 0 : index
    %c0_65 = arith.constant 0 : index
    %38 = vector.load %arg2[%c0_62, %c0_63, %c0_64, %c0_65] : memref<1x3x2x128xf32, #tpu.memory_space<vmem>>, vector<1x1x2x128xf32>
    %39 = vector.shape_cast %38 : vector<1x1x2x128xf32> to vector<2x128xf32>
    %c0_66 = arith.constant 0 : index
    %c1_67 = arith.constant 1 : index
    %c0_68 = arith.constant 0 : index
    %c0_69 = arith.constant 0 : index
    %40 = vector.load %arg2[%c0_66, %c1_67, %c0_68, %c0_69] : memref<1x3x2x128xf32, #tpu.memory_space<vmem>>, vector<1x1x2x128xf32>
    %41 = vector.shape_cast %40 : vector<1x1x2x128xf32> to vector<2x128xf32>
    %c0_70 = arith.constant 0 : index
    %c2_71 = arith.constant 2 : index
    %c0_72 = arith.constant 0 : index
    %c0_73 = arith.constant 0 : index
    %42 = vector.load %arg2[%c0_70, %c2_71, %c0_72, %c0_73] : memref<1x3x2x128xf32, #tpu.memory_space<vmem>>, vector<1x1x2x128xf32>
    %43 = vector.shape_cast %42 : vector<1x1x2x128xf32> to vector<2x128xf32>
    %c0_74 = arith.constant 0 : index
    %c0_75 = arith.constant 0 : index
    %c0_76 = arith.constant 0 : index
    %c0_77 = arith.constant 0 : index
    %44 = vector.load %arg3[%c0_74, %c0_75, %c0_76, %c0_77] : memref<1x4x2x128xf32, #tpu.memory_space<vmem>>, vector<1x1x2x128xf32>
    %45 = vector.shape_cast %44 : vector<1x1x2x128xf32> to vector<2x128xf32>
    %c0_78 = arith.constant 0 : index
    %c1_79 = arith.constant 1 : index
    %c0_80 = arith.constant 0 : index
    %c0_81 = arith.constant 0 : index
    %46 = vector.load %arg3[%c0_78, %c1_79, %c0_80, %c0_81] : memref<1x4x2x128xf32, #tpu.memory_space<vmem>>, vector<1x1x2x128xf32>
    %47 = vector.shape_cast %46 : vector<1x1x2x128xf32> to vector<2x128xf32>
    %c0_82 = arith.constant 0 : index
    %c2_83 = arith.constant 2 : index
    %c0_84 = arith.constant 0 : index
    %c0_85 = arith.constant 0 : index
    %48 = vector.load %arg3[%c0_82, %c2_83, %c0_84, %c0_85] : memref<1x4x2x128xf32, #tpu.memory_space<vmem>>, vector<1x1x2x128xf32>
    %49 = vector.shape_cast %48 : vector<1x1x2x128xf32> to vector<2x128xf32>
    %c0_86 = arith.constant 0 : index
    %c3_87 = arith.constant 3 : index
    %c0_88 = arith.constant 0 : index
    %c0_89 = arith.constant 0 : index
    %50 = vector.load %arg3[%c0_86, %c3_87, %c0_88, %c0_89] : memref<1x4x2x128xf32, #tpu.memory_space<vmem>>, vector<1x1x2x128xf32>
    %51 = vector.shape_cast %50 : vector<1x1x2x128xf32> to vector<2x128xf32>
    %52 = vector.broadcast %5 : f32 to vector<2x128xf32>
    %53 = arith.mulf %39, %52 : vector<2x128xf32>
    %54 = vector.broadcast %9 : f32 to vector<2x128xf32>
    %55 = arith.mulf %41, %54 : vector<2x128xf32>
    %56 = arith.addf %53, %55 : vector<2x128xf32>
    %57 = vector.broadcast %13 : f32 to vector<2x128xf32>
    %58 = arith.mulf %43, %57 : vector<2x128xf32>
    %59 = arith.addf %56, %58 : vector<2x128xf32>
    %60 = vector.broadcast %17 : f32 to vector<2x128xf32>
    %61 = arith.mulf %45, %60 : vector<2x128xf32>
    %62 = arith.addf %59, %61 : vector<2x128xf32>
    %63 = vector.broadcast %21 : f32 to vector<2x128xf32>
    %64 = arith.mulf %47, %63 : vector<2x128xf32>
    %65 = arith.addf %62, %64 : vector<2x128xf32>
    %66 = vector.broadcast %25 : f32 to vector<2x128xf32>
    %67 = arith.mulf %49, %66 : vector<2x128xf32>
    %68 = arith.addf %65, %67 : vector<2x128xf32>
    %69 = vector.broadcast %29 : f32 to vector<2x128xf32>
    %70 = arith.mulf %51, %69 : vector<2x128xf32>
    %71 = arith.addf %68, %70 : vector<2x128xf32>
    %72 = vector.broadcast %33 : f32 to vector<2x128xf32>
    %73 = arith.addf %71, %72 : vector<2x128xf32>
    %74 = arith.mulf %73, %73 : vector<2x128xf32>
    %75 = vector.broadcast %6 : f32 to vector<2x128xf32>
    %76 = arith.mulf %39, %75 : vector<2x128xf32>
    %77 = vector.broadcast %10 : f32 to vector<2x128xf32>
    %78 = arith.mulf %41, %77 : vector<2x128xf32>
    %79 = arith.addf %76, %78 : vector<2x128xf32>
    %80 = vector.broadcast %14 : f32 to vector<2x128xf32>
    %81 = arith.mulf %43, %80 : vector<2x128xf32>
    %82 = arith.addf %79, %81 : vector<2x128xf32>
    %83 = vector.broadcast %18 : f32 to vector<2x128xf32>
    %84 = arith.mulf %45, %83 : vector<2x128xf32>
    %85 = arith.addf %82, %84 : vector<2x128xf32>
    %86 = vector.broadcast %22 : f32 to vector<2x128xf32>
    %87 = arith.mulf %47, %86 : vector<2x128xf32>
    %88 = arith.addf %85, %87 : vector<2x128xf32>
    %89 = vector.broadcast %26 : f32 to vector<2x128xf32>
    %90 = arith.mulf %49, %89 : vector<2x128xf32>
    %91 = arith.addf %88, %90 : vector<2x128xf32>
    %92 = vector.broadcast %30 : f32 to vector<2x128xf32>
    %93 = arith.mulf %51, %92 : vector<2x128xf32>
    %94 = arith.addf %91, %93 : vector<2x128xf32>
    %95 = vector.broadcast %34 : f32 to vector<2x128xf32>
    %96 = arith.addf %94, %95 : vector<2x128xf32>
    %97 = arith.mulf %96, %96 : vector<2x128xf32>
    %98 = arith.addf %74, %97 : vector<2x128xf32>
    %99 = vector.broadcast %7 : f32 to vector<2x128xf32>
    %100 = arith.mulf %39, %99 : vector<2x128xf32>
    %101 = vector.broadcast %11 : f32 to vector<2x128xf32>
    %102 = arith.mulf %41, %101 : vector<2x128xf32>
    %103 = arith.addf %100, %102 : vector<2x128xf32>
    %104 = vector.broadcast %15 : f32 to vector<2x128xf32>
    %105 = arith.mulf %43, %104 : vector<2x128xf32>
    %106 = arith.addf %103, %105 : vector<2x128xf32>
    %107 = vector.broadcast %19 : f32 to vector<2x128xf32>
    %108 = arith.mulf %45, %107 : vector<2x128xf32>
    %109 = arith.addf %106, %108 : vector<2x128xf32>
    %110 = vector.broadcast %23 : f32 to vector<2x128xf32>
    %111 = arith.mulf %47, %110 : vector<2x128xf32>
    %112 = arith.addf %109, %111 : vector<2x128xf32>
    %113 = vector.broadcast %27 : f32 to vector<2x128xf32>
    %114 = arith.mulf %49, %113 : vector<2x128xf32>
    %115 = arith.addf %112, %114 : vector<2x128xf32>
    %116 = vector.broadcast %31 : f32 to vector<2x128xf32>
    %117 = arith.mulf %51, %116 : vector<2x128xf32>
    %118 = arith.addf %115, %117 : vector<2x128xf32>
    %119 = vector.broadcast %35 : f32 to vector<2x128xf32>
    %120 = arith.addf %118, %119 : vector<2x128xf32>
    %121 = arith.mulf %120, %120 : vector<2x128xf32>
    %122 = arith.addf %98, %121 : vector<2x128xf32>
    %123 = vector.broadcast %8 : f32 to vector<2x128xf32>
    %124 = arith.mulf %39, %123 : vector<2x128xf32>
    %125 = vector.broadcast %12 : f32 to vector<2x128xf32>
    %126 = arith.mulf %41, %125 : vector<2x128xf32>
    %127 = arith.addf %124, %126 : vector<2x128xf32>
    %128 = vector.broadcast %16 : f32 to vector<2x128xf32>
    %129 = arith.mulf %43, %128 : vector<2x128xf32>
    %130 = arith.addf %127, %129 : vector<2x128xf32>
    %131 = vector.broadcast %20 : f32 to vector<2x128xf32>
    %132 = arith.mulf %45, %131 : vector<2x128xf32>
    %133 = arith.addf %130, %132 : vector<2x128xf32>
    %134 = vector.broadcast %24 : f32 to vector<2x128xf32>
    %135 = arith.mulf %47, %134 : vector<2x128xf32>
    %136 = arith.addf %133, %135 : vector<2x128xf32>
    %137 = vector.broadcast %28 : f32 to vector<2x128xf32>
    %138 = arith.mulf %49, %137 : vector<2x128xf32>
    %139 = arith.addf %136, %138 : vector<2x128xf32>
    %140 = vector.broadcast %32 : f32 to vector<2x128xf32>
    %141 = arith.mulf %51, %140 : vector<2x128xf32>
    %142 = arith.addf %139, %141 : vector<2x128xf32>
    %143 = vector.broadcast %36 : f32 to vector<2x128xf32>
    %144 = arith.addf %142, %143 : vector<2x128xf32>
    %145 = arith.mulf %144, %144 : vector<2x128xf32>
    %146 = arith.addf %122, %145 : vector<2x128xf32>
    %147 = arith.addf %37, %146 : vector<2x128xf32>
    %c0_90 = arith.constant 0 : index
    %c0_91 = arith.constant 0 : index
    %148 = vector.load %arg7[%c0_90, %c0_91] : memref<2x128xf32, #tpu.memory_space<vmem>>, vector<2x128xf32>
    %149 = arith.addf %148, %147 : vector<2x128xf32>
    %c0_92 = arith.constant 0 : index
    %c0_93 = arith.constant 0 : index
    %150 = vector.load %arg7[%c0_92, %c0_93] : memref<2x128xf32, #tpu.memory_space<vmem>>, vector<2x128xf32>
    tpu.vector_store %arg7[%c0_92, %c0_93], %149 {strides = array<i32>} : memref<2x128xf32, #tpu.memory_space<vmem>>, vector<2x128xf32>,
    return
  }
  func.func @transform_0(%arg0: i32, %arg1: i32) -> (i32, i32, i32, i32) {
    %c0_i32 = arith.constant 0 : i32
    %c0_i32_0 = arith.constant 0 : i32
    %c0_i32_1 = arith.constant 0 : i32
    return %arg0, %c0_i32, %arg1, %c0_i32_0 : i32, i32, i32, i32
  }
  func.func @transform_1(%arg0: i32, %arg1: i32) -> (i32, i32, i32, i32) {
    %c0_i32 = arith.constant 0 : i32
    %c0_i32_0 = arith.constant 0 : i32
    %c0_i32_1 = arith.constant 0 : i32
    return %arg0, %c0_i32, %arg1, %c0_i32_0 : i32, i32, i32, i32
  }
  func.func @transform_2(%arg0: i32, %arg1: i32) -> (i32, i32) {
    %c0_i32 = arith.constant 0 : i32
    %c0_i32_0 = arith.constant 0 : i32
    %c0_i32_1 = arith.constant 0 : i32
    return %c0_i32, %c0_i32_0 : i32, i32
  }
  func.func @transform_3(%arg0: i32, %arg1: i32) -> (i32, i32) {
    %c0_i32 = arith.constant 0 : i32
    %c0_i32_0 = arith.constant 0 : i32
    %c0_i32_1 = arith.constant 0 : i32
    return %c0_i32, %c0_i32_0 : i32, i32
  }
  func.func @transform_4(%arg0: i32, %arg1: i32) -> (i32, i32) {
    %c0_i32 = arith.constant 0 : i32
    %c0_i32_0 = arith.constant 0 : i32
    %c0_i32_1 = arith.constant 0 : i32
    return %c0_i32, %c0_i32_0 : i32, i32
  }
  func.func @transform_5(%arg0: i32, %arg1: i32) -> (i32, i32) {
    %c0_i32 = arith.constant 0 : i32
    %c0_i32_0 = arith.constant 0 : i32
    %c0_i32_1 = arith.constant 0 : i32
    return %c0_i32, %c0_i32_0 : i32, i32
  }
}

</mosaic_0001>

<llo_original>
// kernel: tpu_custom_call.1
$region0: #{tpu_custom_call.1}
  #allocation0 [shape = 'u32[]', space=smem, size = 0x4, offset = 0x4, fixed_abs, tag = 'smem constant byte address 0x4 - core index']
  #allocation1 [shape = 'u32[72,128]{1,0:T(1,128)}', space=vmem, size = 0x9000, scoped, tag = 'internal scratch']
  %s0 = inlined_call_operand.hbm [shape: f32[2,3,2,128], index: 0, kind: input, shape index: {}]
  %s1 = inlined_call_operand.hbm [shape: f32[2,4,2,128], index: 1, kind: input, shape index: {}]
  %s2 = inlined_call_operand.hbm [shape: f32[3,4], index: 2, kind: input, shape index: {}]
  %s3 = inlined_call_operand.hbm [shape: f32[4,4], index: 3, kind: input, shape index: {}]
  %s4 = inlined_call_operand.vmem [shape: f32[1,4], index: 4, kind: input, shape index: {}]
  %s5 = inlined_call_operand.hbm [shape: f32[2,128], index: 5, kind: output, shape index: {}]
  %s6 = sld [smem:[#allocation0]]
  $region77: #{tpu_custom_call.1} parent=0
    _
  %s8 = ssub.s32 1, %s6
  %s9 = scalar_select 0, %s8, %s6
  $region1: #{tpu_custom_call.1} parent=0
    #allocation2 [shape = 'u8[6144]{0}', space=vmem, size = 0x1800, scoped, tag = 'input window, operand 0']
    #allocation3 [shape = 's32[2]{0}', space=sflag, size = 0x8, scoped, tag = 'scoped memory for tpu_custom_call.1']
    #allocation4 [shape = 's32[2]{0}', space=sflag, size = 0x8, scoped, tag = 'scoped memory for tpu_custom_call.1']
    #allocation5 [shape = 's32[2]{0}', space=sflag, size = 0x8, scoped, tag = 'scoped memory for tpu_custom_call.1']
    #allocation6 [shape = 's32[2]{0}', space=sflag, size = 0x8, scoped, tag = 'scoped memory for tpu_custom_call.1']
    #allocation7 [shape = 'u8[8192]{0}', space=vmem, size = 0x2000, scoped, tag = 'input window, operand 1']
    #allocation8 [shape = 's32[2]{0}', space=sflag, size = 0x8, scoped, tag = 'scoped memory for tpu_custom_call.1']
    #allocation9 [shape = 'u8[2048]{0}', space=smem, size = 0x800, scoped, tag = 'input window, operand 2, single buffered']
    #allocation10 [shape = 'u8[2048]{0}', space=smem, size = 0x800, scoped, tag = 'input window, operand 3, single buffered']
    #allocation11 [shape = 's32[1]{0}', space=sflag, size = 0x4, scoped, tag = 'scoped memory for tpu_custom_call.1']
    #allocation12 [shape = 'u8[512]{0}', space=smem, size = 0x200, scoped, tag = 'input window, operand 4, single buffered']
    #allocation13 [shape = 'u8[1024]{0}', space=vmem, size = 0x400, scoped, tag = 'output window, operand 0, single buffered']
    %10 = vsyncpa [#allocation3], 0
    %s11 = scalar_lea.sflag [#allocation3], 1
    %12 = vsyncpa %s11, 0
    %13 = vsyncpa [#allocation8], 0
    %s14 = scalar_lea.sflag [#allocation8], 1
    %15 = vsyncpa %s14, 0
    %16 = vsyncpa [#allocation5], 0
    %17 = vsyncpa [#allocation11], 0
    %18 = vsyncpa [#allocation6], 0
    %19 = vsyncpa [#allocation4], 0
    loop: start=0, step=1, limit=4
    $region2: #{tpu_custom_call.1} parent=1 // loop_pre_header
      _
    $region3: #{tpu_custom_call.1} parent=1 // loop_header
      %s21 = sphi 0, %s25
      %p22 = scmp.ge.s32.totalorder %s21, 4
      %s28 = sphi 0, %s40
      %s29 = sphi 0, %s36
      %s30 = sphi 0, %s28
      %s31 = sphi 0, %s29
      %s32 = sphi 0, %s30
      %s33 = sphi 0, %s31
      %s45 = sphi 0, %s47
      %s48 = sphi 0, %s45
      %s49 = sphi 0, %s48
      %s65 = sphi 0, %s49
      %s73 = sphi 0, %s75
      %s76 = sphi 0, %s73
      %s77 = sphi 0, %s76
      %s93 = sphi 0, %s77
      %s97 = sphi 0, %s97
      %s99 = sphi 0, %s97
      %s100 = sphi 0, %s99
      %s114 = sphi 0, %s100
      %s118 = sphi 0, %s118
      %s120 = sphi 0, %s118
      %s121 = sphi 0, %s120
      %s135 = sphi 0, %s121
      %s139 = sphi 0, %s139
      %s141 = sphi 0, %s139
      %s142 = sphi 0, %s141
      %s156 = sphi 0, %s142
      %s160 = sphi 0, %s160
      %s162 = sphi 0, %s160
      %s163 = sphi 0, %s162
      %s177 = sphi 0, %s163
    $region4: #{tpu_custom_call.1} parent=1 // loop_header_branch
      %24 = sbr.rel (%p22) target = $region8
    $region5: #{tpu_custom_call.1} parent=1 // loop_body
      %s26 = ssub.s32 %s21, 1
      %s27 = ssub.s32 %s21, 2
      %s34 = sadd.s32 1, %s29
      %p35 = scmp.ge.s32.totalorder %s34, 1
      %s36 = scalar_select %p35, 0, %s34
      %s37 = sadd.s32 1, %s28
      %s38 = scalar_select %p35, %s37, %s28
      %p39 = scmp.ge.s32.totalorder %s38, 2
      %s40 = scalar_select %p39, 0, %s38
      %s41 = ssub.s32 %s28, %s40
      %s42 = ssub.s32 %s29, %s36
      %s43 = sor.u32 %s41, %s42
      %p44 = scmp.eq.s32.totalorder %s43, 0
      %s46 = sadd.s32 %s45, 1
      %s47 = scalar_select %p44, %s45, %s46
      %p50 = pneg %p44
      %p51 = scmp.eq.s32.totalorder %s21, 1
      %p52 = por %p50, %p51
      %p53 = scmp.ne.s32.totalorder %s45, %s48
      %p54 = scmp.eq.s32.totalorder %s21, 0
      %p55 = por %p53, %p54
      %p56 = scmp.ne.s32.totalorder %s45, %s48
      %p57 = scmp.eq.s32.totalorder %s26, 1
      %p58 = por %p56, %p57
      %p59 = scmp.ne.s32.totalorder %s48, %s49
      %p60 = scmp.eq.s32.totalorder %s26, 0
      %p61 = por %p59, %p60
      %p62 = scmp.ne.s32.totalorder %s48, %s49
      %p63 = scmp.eq.s32.totalorder %s27, 1
      %p64 = por %p62, %p63
      %p66 = scmp.ne.s32.totalorder %s49, %s65
      %p67 = scmp.eq.s32.totalorder %s27, 0
      %p68 = por %p66, %p67
      %s69 = ssub.s32 %s28, %s40
      %s70 = ssub.s32 %s29, %s36
      %s71 = sor.u32 %s69, %s70
      %p72 = scmp.eq.s32.totalorder %s71, 0
      %s74 = sadd.s32 %s73, 1
      %s75 = scalar_select %p72, %s73, %s74
      %p78 = pneg %p72
      %p79 = scmp.eq.s32.totalorder %s21, 1
      %p80 = por %p78, %p79
      %p81 = scmp.ne.s32.totalorder %s73, %s76
      %p82 = scmp.eq.s32.totalorder %s21, 0
      %p83 = por %p81, %p82
      %p84 = scmp.ne.s32.totalorder %s73, %s76
      %p85 = scmp.eq.s32.totalorder %s26, 1
      %p86 = por %p84, %p85
      %p87 = scmp.ne.s32.totalorder %s76, %s77
      %p88 = scmp.eq.s32.totalorder %s26, 0
      %p89 = por %p87, %p88
      %p90 = scmp.ne.s32.totalorder %s76, %s77
      %p91 = scmp.eq.s32.totalorder %s27, 1
      %p92 = por %p90, %p91
      %p94 = scmp.ne.s32.totalorder %s77, %s93
      %p95 = scmp.eq.s32.totalorder %s27, 0
      %p96 = por %p94, %p95
      %s98 = sadd.s32 %s97, 1
      %p101 = scmp.eq.s32.totalorder %s21, 1
      %p102 = scmp.ne.s32.totalorder %s97, %s99
      %p103 = scmp.eq.s32.totalorder %s21, 0
      %p104 = por %p102, %p103
      %p105 = scmp.ne.s32.totalorder %s97, %s99
      %p106 = scmp.eq.s32.totalorder %s26, 1
      %p107 = por %p105, %p106
      %p108 = scmp.ne.s32.totalorder %s99, %s100
      %p109 = scmp.eq.s32.totalorder %s26, 0
      %p110 = por %p108, %p109
      %p111 = scmp.ne.s32.totalorder %s99, %s100
      %p112 = scmp.eq.s32.totalorder %s27, 1
      %p113 = por %p111, %p112
      %p115 = scmp.ne.s32.totalorder %s100, %s114
      %p116 = scmp.eq.s32.totalorder %s27, 0
      %p117 = por %p115, %p116
      %s119 = sadd.s32 %s118, 1
      %p122 = scmp.eq.s32.totalorder %s21, 1
      %p123 = scmp.ne.s32.totalorder %s118, %s120
      %p124 = scmp.eq.s32.totalorder %s21, 0
      %p125 = por %p123, %p124
      %p126 = scmp.ne.s32.totalorder %s118, %s120
      %p127 = scmp.eq.s32.totalorder %s26, 1
      %p128 = por %p126, %p127
      %p129 = scmp.ne.s32.totalorder %s120, %s121
      %p130 = scmp.eq.s32.totalorder %s26, 0
      %p131 = por %p129, %p130
      %p132 = scmp.ne.s32.totalorder %s120, %s121
      %p133 = scmp.eq.s32.totalorder %s27, 1
      %p134 = por %p132, %p133
      %p136 = scmp.ne.s32.totalorder %s121, %s135
      %p137 = scmp.eq.s32.totalorder %s27, 0
      %p138 = por %p136, %p137
      %s140 = sadd.s32 %s139, 1
      %p143 = scmp.eq.s32.totalorder %s21, 1
      %p144 = scmp.ne.s32.totalorder %s139, %s141
      %p145 = scmp.eq.s32.totalorder %s21, 0
      %p146 = por %p144, %p145
      %p147 = scmp.ne.s32.totalorder %s139, %s141
      %p148 = scmp.eq.s32.totalorder %s26, 1
      %p149 = por %p147, %p148
      %p150 = scmp.ne.s32.totalorder %s141, %s142
      %p151 = scmp.eq.s32.totalorder %s26, 0
      %p152 = por %p150, %p151
      %p153 = scmp.ne.s32.totalorder %s141, %s142
      %p154 = scmp.eq.s32.totalorder %s27, 1
      %p155 = por %p153, %p154
      %p157 = scmp.ne.s32.totalorder %s142, %s156
      %p158 = scmp.eq.s32.totalorder %s27, 0
      %p159 = por %p157, %p158
      %s161 = sadd.s32 %s160, 1
      %p164 = scmp.eq.s32.totalorder %s21, 1
      %p165 = scmp.ne.s32.totalorder %s160, %s162
      %p166 = scmp.eq.s32.totalorder %s21, 0
      %p167 = por %p165, %p166
      %p168 = scmp.ne.s32.totalorder %s160, %s162
      %p169 = scmp.eq.s32.totalorder %s26, 1
      %p170 = por %p168, %p169
      %p171 = scmp.ne.s32.totalorder %s162, %s163
      %p172 = scmp.eq.s32.totalorder %s26, 0
      %p173 = por %p171, %p172
      %p174 = scmp.ne.s32.totalorder %s162, %s163
      %p175 = scmp.eq.s32.totalorder %s27, 1
      %p176 = por %p174, %p175
      %p178 = scmp.ne.s32.totalorder %s163, %s177
      %p179 = scmp.eq.s32.totalorder %s27, 0
      %p180 = por %p178, %p179
      %p181 = scmp.le.s32.totalorder 1, %s21
      %p182 = scmp.lt.s32.totalorder %s21, 3
      %p183 = pnand %p181, %p182
      %p184 = pneg %p183
      // Predicated region
      $region9: #{tpu_custom_call.1} parent=5 // pred_check
        _
      $region10: #{tpu_custom_call.1} parent=5 // pred_check_branch
        %186 = sbr.rel (%p183) target = $region12
      $region11: #{tpu_custom_call.1} parent=5 // pred_region
        %s187 = ssub.s32 %s21, 1
        // Predicated region
        $region13: #{tpu_custom_call.1} parent=11 // pred_check
          %p188 = pneg %p110
        $region14: #{tpu_custom_call.1} parent=11 // pred_check_branch
          %190 = sbr.rel (%p188) target = $region16
        $region15: #{tpu_custom_call.1} parent=11 // pred_region
          %192 = vsyncadd [#allocation5], 0
          %s194 = sshll.u32 %s2, 4
          %s195 = int_to_ptr.hbm [resolvable:$true] %s194
          %197 = dma.hbm_to_smem %s195, 64, [#allocation9], [#allocation5]
        $region16: #{tpu_custom_call.1} parent=11 // pred_fallthru
          _
        // Predicated region
        $region17: #{tpu_custom_call.1} parent=11 // pred_check
          %p198 = pneg %p131
        $region18: #{tpu_custom_call.1} parent=11 // pred_check_branch
          %200 = sbr.rel (%p198) target = $region20
        $region19: #{tpu_custom_call.1} parent=11 // pred_region
          %202 = vsyncadd [#allocation11], 0
          %s204 = sshll.u32 %s3, 4
          %s205 = int_to_ptr.hbm [resolvable:$true] %s204
          %207 = dma.hbm_to_smem %s205, 64, [#allocation10], [#allocation11]
        $region20: #{tpu_custom_call.1} parent=11 // pred_fallthru
          _
        // Predicated region
        $region21: #{tpu_custom_call.1} parent=11 // pred_check
          %p208 = pneg %p152
        $region22: #{tpu_custom_call.1} parent=11 // pred_check_branch
          %210 = sbr.rel (%p208) target = $region24
        $region23: #{tpu_custom_call.1} parent=11 // pred_region
          %212 = vsyncadd [#allocation6], 0
          %s214 = sshll.u32 %s4, 4
          %s215 = int_to_ptr.vmem [resolvable:$true] %s214
          %217 = dma.vmem_to_smem %s215, 16, [#allocation12], [#allocation6]
        $region24: #{tpu_custom_call.1} parent=11 // pred_fallthru
          _
      $region12: #{tpu_custom_call.1} parent=5 // pred_fallthru
        _
      %p218 = scmp.lt.s32.totalorder %s21, 2
      // Predicated region
      $region25: #{tpu_custom_call.1} parent=5 // pred_check
        %p219 = pneg %p218
      $region26: #{tpu_custom_call.1} parent=5 // pred_check_branch
        %221 = sbr.rel (%p219) target = $region28
      $region27: #{tpu_custom_call.1} parent=5 // pred_region
        // Predicated region
        $region29: #{tpu_custom_call.1} parent=27 // pred_check
          %p222 = pneg %p55
        $region30: #{tpu_custom_call.1} parent=27 // pred_check_branch
          %224 = sbr.rel (%p222) target = $region32
        $region31: #{tpu_custom_call.1} parent=27 // pred_region
          %s225 = sand.u32 %s45, 1
          %s226 = scalar_lea.sflag [#allocation3], %s225
          %s227 = sand.u32 %s45, 1
          %s228 = smul.addr %s227, 6
          %s229 = scalar_lea.vmem [#allocation2], %s228
          %231 = vsyncadd %s226, 0
          %s232 = smul.addr %s28, 3
          %s233 = sadd.s32 %s29, %s232
          %s234 = smul.addr %s233, 2
          %s235 = scalar_lea.hbm %s0, %s234
          %s236 = sshll.u32 %s235, 4
          %s237 = int_to_ptr.hbm [resolvable:$true] %s236
          %s238 = sshll.u32 %s229, 4
          %s239 = int_to_ptr.vmem [resolvable:$true] %s238
          %244 = dma.hbm_to_vmem [thread:$0]  %s237, 96, %s239, %s226, 32, 32, 2
        $region32: #{tpu_custom_call.1} parent=27 // pred_fallthru
          _
        // Predicated region
        $region33: #{tpu_custom_call.1} parent=27 // pred_check
          %p245 = pneg %p83
        $region34: #{tpu_custom_call.1} parent=27 // pred_check_branch
          %247 = sbr.rel (%p245) target = $region36
        $region35: #{tpu_custom_call.1} parent=27 // pred_region
          %s248 = sand.u32 %s73, 1
          %s249 = scalar_lea.sflag [#allocation8], %s248
          %s250 = sand.u32 %s73, 1
          %s251 = smul.addr %s250, 8
          %s252 = scalar_lea.vmem [#allocation7], %s251
          %254 = vsyncadd %s249, 0
          %s255 = smul.addr %s28, 4
          %s256 = sadd.s32 %s29, %s255
          %s257 = smul.addr %s256, 2
          %s258 = scalar_lea.hbm %s1, %s257
          %s259 = sshll.u32 %s258, 4
          %s260 = int_to_ptr.hbm [resolvable:$true] %s259
          %s261 = sshll.u32 %s252, 4
          %s262 = int_to_ptr.vmem [resolvable:$true] %s261
          %267 = dma.hbm_to_vmem [thread:$0]  %s260, 128, %s262, %s249, 32, 32, 2
        $region36: #{tpu_custom_call.1} parent=27 // pred_fallthru
          _
      $region28: #{tpu_custom_call.1} parent=5 // pred_fallthru
        _
      %p268 = scmp.le.s32.totalorder 1, %s21
      %p269 = scmp.lt.s32.totalorder %s21, 3
      %p270 = pnand %p268, %p269
      %p271 = pneg %p270
      // Predicated region
      $region37: #{tpu_custom_call.1} parent=5 // pred_check
        _
      $region38: #{tpu_custom_call.1} parent=5 // pred_check_branch
        %273 = sbr.rel (%p270) target = $region40
      $region39: #{tpu_custom_call.1} parent=5 // pred_region
        %s274 = ssub.s32 %s21, 1
        %s275 = sand.u32 %s48, 1
        %s276 = scalar_lea.sflag [#allocation3], %s275
        %s277 = sand.u32 %s48, 1
        %s278 = smul.addr %s277, 6
        %s279 = scalar_lea.vmem [#allocation2], %s278
        // Predicated region
        $region41: #{tpu_custom_call.1} parent=39 // pred_check
          %p280 = pneg %p61
        $region42: #{tpu_custom_call.1} parent=39 // pred_check_branch
          %282 = sbr.rel (%p280) target = $region44
        $region43: #{tpu_custom_call.1} parent=39 // pred_region
          %284 = dma.done %s276, 96
        $region44: #{tpu_custom_call.1} parent=39 // pred_fallthru
          _
        %s285 = sand.u32 %s76, 1
        %s286 = scalar_lea.sflag [#allocation8], %s285
        %s287 = sand.u32 %s76, 1
        %s288 = smul.addr %s287, 8
        %s289 = scalar_lea.vmem [#allocation7], %s288
        // Predicated region
        $region45: #{tpu_custom_call.1} parent=39 // pred_check
          %p290 = pneg %p89
        $region46: #{tpu_custom_call.1} parent=39 // pred_check_branch
          %292 = sbr.rel (%p290) target = $region48
        $region47: #{tpu_custom_call.1} parent=39 // pred_region
          %294 = dma.done %s286, 128
        $region48: #{tpu_custom_call.1} parent=39 // pred_fallthru
          _
        // Predicated region
        $region49: #{tpu_custom_call.1} parent=39 // pred_check
          %p295 = pneg %p110
        $region50: #{tpu_custom_call.1} parent=39 // pred_check_branch
          %297 = sbr.rel (%p295) target = $region52
        $region51: #{tpu_custom_call.1} parent=39 // pred_region
          %299 = dma.done [#allocation5], 64
        $region52: #{tpu_custom_call.1} parent=39 // pred_fallthru
          _
        // Predicated region
        $region53: #{tpu_custom_call.1} parent=39 // pred_check
          %p300 = pneg %p131
        $region54: #{tpu_custom_call.1} parent=39 // pred_check_branch
          %302 = sbr.rel (%p300) target = $region56
        $region55: #{tpu_custom_call.1} parent=39 // pred_region
          %304 = dma.done [#allocation11], 64
        $region56: #{tpu_custom_call.1} parent=39 // pred_fallthru
          _
        // Predicated region
        $region57: #{tpu_custom_call.1} parent=39 // pred_check
          %p305 = pneg %p152
        $region58: #{tpu_custom_call.1} parent=39 // pred_check_branch
          %307 = sbr.rel (%p305) target = $region60
        $region59: #{tpu_custom_call.1} parent=39 // pred_region
          %309 = dma.done [#allocation6], 16
        $region60: #{tpu_custom_call.1} parent=39 // pred_fallthru
          _
        %310 = sfence
        %s311 = sand.u32 %s48, 1
        %s312 = scalar_lea.sflag [#allocation3], %s311
        %s313 = sand.u32 %s48, 1
        %s314 = smul.addr %s313, 6
        %s315 = scalar_lea.vmem [#allocation2], %s314
        %p316 = pneg %p61
        %p317 = pneg %p58
        %s318 = sand.u32 %s76, 1
        %s319 = scalar_lea.sflag [#allocation8], %s318
        %s320 = sand.u32 %s76, 1
        %s321 = smul.addr %s320, 8
        %s322 = scalar_lea.vmem [#allocation7], %s321
        %p323 = pneg %p89
        %p324 = pneg %p86
        %p325 = pneg %p110
        %p326 = pneg %p107
        %p327 = pneg %p131
        %p328 = pneg %p128
        %p329 = pneg %p152
        %p330 = pneg %p149
        %p331 = pneg %p173
        %p332 = pneg %p170
        %p333 = scmp.eq.s32.totalorder %s30, 0
        %p334 = scmp.eq.s32.totalorder %s31, 0
        %p335 = pnand %p333, %p334
        %p336 = pneg %p335
        // Predicated region
        $region61: #{tpu_custom_call.1} parent=39 // pred_check
          _
        $region62: #{tpu_custom_call.1} parent=39 // pred_check_branch
          %338 = sbr.rel (%p335) target = $region64
        $region63: #{tpu_custom_call.1} parent=39 // pred_region
          %339 = vst [vmem:[#allocation13] sm:$0x3] 0.0
        $region64: #{tpu_custom_call.1} parent=39 // pred_fallthru
          _
        %s340 = sld [smem:[#allocation9]]
        %s341 = sld [smem:[#allocation9 + $0x1]]
        %s342 = sld [smem:[#allocation9 + $0x2]]
        %s343 = sld [smem:[#allocation9 + $0x3]]
        %s344 = sld [smem:[#allocation9 + $0x80]]
        %s345 = sld [smem:[#allocation9 + $0x81]]
        %s346 = sld [smem:[#allocation9 + $0x82]]
        %s347 = sld [smem:[#allocation9 + $0x83]]
        %s348 = sld [smem:[#allocation9 + $0x100]]
        %s349 = sld [smem:[#allocation9 + $0x101]]
        %s350 = sld [smem:[#allocation9 + $0x102]]
        %s351 = sld [smem:[#allocation9 + $0x103]]
        %s352 = sld [smem:[#allocation10]]
        %s353 = sld [smem:[#allocation10 + $0x1]]
        %s354 = sld [smem:[#allocation10 + $0x2]]
        %s355 = sld [smem:[#allocation10 + $0x3]]
        %s356 = sld [smem:[#allocation10 + $0x80]]
        %s357 = sld [smem:[#allocation10 + $0x81]]
        %s358 = sld [smem:[#allocation10 + $0x82]]
        %s359 = sld [smem:[#allocation10 + $0x83]]
        %s360 = sld [smem:[#allocation10 + $0x100]]
        %s361 = sld [smem:[#allocation10 + $0x101]]
        %s362 = sld [smem:[#allocation10 + $0x102]]
        %s363 = sld [smem:[#allocation10 + $0x103]]
        %s364 = sld [smem:[#allocation10 + $0x180]]
        %s365 = sld [smem:[#allocation10 + $0x181]]
        %s366 = sld [smem:[#allocation10 + $0x182]]
        %s367 = sld [smem:[#allocation10 + $0x183]]
        %s368 = sld [smem:[#allocation12]]
        %s369 = sld [smem:[#allocation12 + $0x1]]
        %s370 = sld [smem:[#allocation12 + $0x2]]
        %s371 = sld [smem:[#allocation12 + $0x3]]
        %v372 = vld [vmem:[%s279] sm:$0x3]
        %s373 = scalar_lea.vmem %s279, 2 [#allocation2]
        %v374 = vld [vmem:[%s373] sm:$0x3]
        %s375 = scalar_lea.vmem %s279, 4 [#allocation2]
        %v376 = vld [vmem:[%s375] sm:$0x3]
        %v377 = vld [vmem:[%s289] sm:$0x3]
        %s378 = scalar_lea.vmem %s289, 2 [#allocation7]
        %v379 = vld [vmem:[%s378] sm:$0x3]
        %s380 = scalar_lea.vmem %s289, 4 [#allocation7]
        %v381 = vld [vmem:[%s380] sm:$0x3]
        %s382 = scalar_lea.vmem %s289, 6 [#allocation7]
        %v383 = vld [vmem:[%s382] sm:$0x3]
        %v384 = vstv %s340
        %v385 = vmul.f32 %v372, %v384
        %v386 = vstv %s344
        %v387 = vmul.f32 %v374, %v386
        %v388 = vadd.f32 %v385, %v387
        %v389 = vstv %s348
        %v390 = vmul.f32 %v376, %v389
        %v391 = vadd.f32 %v388, %v390
        %v392 = vstv %s352
        %v393 = vmul.f32 %v377, %v392
        %v394 = vadd.f32 %v391, %v393
        %v395 = vstv %s356
        %v396 = vmul.f32 %v379, %v395
        %v397 = vadd.f32 %v394, %v396
        %v398 = vstv %s360
        %v399 = vmul.f32 %v381, %v398
        %v400 = vadd.f32 %v397, %v399
        %v401 = vstv %s364
        %v402 = vmul.f32 %v383, %v401
        %v403 = vadd.f32 %v400, %v402
        %v404 = vstv %s368
        %v405 = vadd.f32 %v403, %v404
        %v406 = vmul.f32 %v405, %v405
        %v407 = vstv %s341
        %v408 = vmul.f32 %v372, %v407
        %v409 = vstv %s345
        %v410 = vmul.f32 %v374, %v409
        %v411 = vadd.f32 %v408, %v410
        %v412 = vstv %s349
        %v413 = vmul.f32 %v376, %v412
        %v414 = vadd.f32 %v411, %v413
        %v415 = vstv %s353
        %v416 = vmul.f32 %v377, %v415
        %v417 = vadd.f32 %v414, %v416
        %v418 = vstv %s357
        %v419 = vmul.f32 %v379, %v418
        %v420 = vadd.f32 %v417, %v419
        %v421 = vstv %s361
        %v422 = vmul.f32 %v381, %v421
        %v423 = vadd.f32 %v420, %v422
        %v424 = vstv %s365
        %v425 = vmul.f32 %v383, %v424
        %v426 = vadd.f32 %v423, %v425
        %v427 = vstv %s369
        %v428 = vadd.f32 %v426, %v427
        %v429 = vmul.f32 %v428, %v428
        %v430 = vadd.f32 %v406, %v429
        %v431 = vstv %s342
        %v432 = vmul.f32 %v372, %v431
        %v433 = vstv %s346
        %v434 = vmul.f32 %v374, %v433
        %v435 = vadd.f32 %v432, %v434
        %v436 = vstv %s350
        %v437 = vmul.f32 %v376, %v436
        %v438 = vadd.f32 %v435, %v437
        %v439 = vstv %s354
        %v440 = vmul.f32 %v377, %v439
        %v441 = vadd.f32 %v438, %v440
        %v442 = vstv %s358
        %v443 = vmul.f32 %v379, %v442
        %v444 = vadd.f32 %v441, %v443
        %v445 = vstv %s362
        %v446 = vmul.f32 %v381, %v445
        %v447 = vadd.f32 %v444, %v446
        %v448 = vstv %s366
        %v449 = vmul.f32 %v383, %v448
        %v450 = vadd.f32 %v447, %v449
        %v451 = vstv %s370
        %v452 = vadd.f32 %v450, %v451
        %v453 = vmul.f32 %v452, %v452
        %v454 = vadd.f32 %v430, %v453
        %v455 = vstv %s343
        %v456 = vmul.f32 %v372, %v455
        %v457 = vstv %s347
        %v458 = vmul.f32 %v374, %v457
        %v459 = vadd.f32 %v456, %v458
        %v460 = vstv %s351
        %v461 = vmul.f32 %v376, %v460
        %v462 = vadd.f32 %v459, %v461
        %v463 = vstv %s355
        %v464 = vmul.f32 %v377, %v463
        %v465 = vadd.f32 %v462, %v464
        %v466 = vstv %s359
        %v467 = vmul.f32 %v379, %v466
        %v468 = vadd.f32 %v465, %v467
        %v469 = vstv %s363
        %v470 = vmul.f32 %v381, %v469
        %v471 = vadd.f32 %v468, %v470
        %v472 = vstv %s367
        %v473 = vmul.f32 %v383, %v472
        %v474 = vadd.f32 %v471, %v473
        %v475 = vstv %s371
        %v476 = vadd.f32 %v474, %v475
        %v477 = vmul.f32 %v476, %v476
        %v478 = vadd.f32 %v454, %v477
        %v479 = vadd.f32 %v478, 0.0
        %v480 = vld [vmem:[#allocation13] sm:$0x3]
        %v481 = vadd.f32 %v480, %v479
        %482 = vst [vmem:[#allocation13] sm:$0x3] %v481
        // Predicated region
        $region65: #{tpu_custom_call.1} parent=39 // pred_check
          %p483 = pneg %p170
        $region66: #{tpu_custom_call.1} parent=39 // pred_check_branch
          %485 = sbr.rel (%p483) target = $region68
        $region67: #{tpu_custom_call.1} parent=39 // pred_region
          %487 = vsyncadd [#allocation4], 0
          %s489 = sshll.u32 [#allocation13], 4
          %s490 = int_to_ptr.vmem [resolvable:$true] %s489
          %s491 = sshll.u32 %s5, 4
          %s492 = int_to_ptr.hbm [resolvable:$true] %s491
          %494 = dma.vmem_to_hbm [thread:$0]  %s490, 32, %s492, [#allocation4]
        $region68: #{tpu_custom_call.1} parent=39 // pred_fallthru
          _
        // Predicated region
        $region69: #{tpu_custom_call.1} parent=39 // pred_check
          %p495 = pneg %p170
        $region70: #{tpu_custom_call.1} parent=39 // pred_check_branch
          %497 = sbr.rel (%p495) target = $region72
        $region71: #{tpu_custom_call.1} parent=39 // pred_region
          %499 = dma.done [#allocation4], 32
        $region72: #{tpu_custom_call.1} parent=39 // pred_fallthru
          _
      $region40: #{tpu_custom_call.1} parent=5 // pred_fallthru
        _
      %p500 = scmp.le.s32.totalorder 2, %s21
      // Predicated region
      $region73: #{tpu_custom_call.1} parent=5 // pred_check
        %p501 = pneg %p500
      $region74: #{tpu_custom_call.1} parent=5 // pred_check_branch
        %503 = sbr.rel (%p501) target = $region76
      $region75: #{tpu_custom_call.1} parent=5 // pred_region
        %s504 = ssub.s32 %s21, 2
      $region76: #{tpu_custom_call.1} parent=5 // pred_fallthru
        _
    $region6: #{tpu_custom_call.1} parent=1 // loop_footer
      %s25 = sadd.s32 1, %s21
    $region7: #{tpu_custom_call.1} parent=1 // loop_footer_branch
      %20 = sbr.rel target = $region3
    $region8: #{tpu_custom_call.1} parent=1 // loop_exit
      _
    %505 = vsyncpa [#allocation3], 1
    %s506 = scalar_lea.sflag [#allocation3], 1
    %507 = vsyncpa %s506, 1
    %508 = vsyncpa [#allocation8], 1
    %s509 = scalar_lea.sflag [#allocation8], 1
    %510 = vsyncpa %s509, 1
    %511 = vsyncpa [#allocation4], 1
    %s512 = scalar_lea.sflag [#allocation4], 1
    %513 = vsyncpa %s512, 1
    %514 = vsyncpa [#allocation5], 1
    %s515 = scalar_lea.sflag [#allocation5], 1
    %516 = vsyncpa %s515, 1
    %517 = vsyncpa [#allocation11], 1
    %518 = vsyncpa [#allocation6], 1
    %s519 = scalar_lea.sflag [#allocation6], 1
    %520 = vsyncpa %s519, 1

</llo_original>
